<compile_context>
chip_gen: v7x
topology: tpu7x:2x2x1
jax: 0.10.0
libtpu: 0.0.40
codegen_flags: <defaults>
</compile_context>

<pallas_src>
import functools

import numpy as np
import jax
import jax.numpy as jnp
from jax.experimental import pallas as pl
from jax.experimental.pallas import tpu as pltpu

# Deterministic "parameters": the 5-tap Gaussian from EdgeLoss.__init__
# (k^T @ k, identical for every channel -> depthwise conv) and the
# CharbonnierLoss default eps.
KVEC = (0.05, 0.25, 0.4, 0.25, 0.05)
EPS = 1e-3


# ---------------------------------------------------------------------------
# Host-side construction of the banded Laplacian operators (cached per shape).
# ---------------------------------------------------------------------------
def _gauss_band_matrix(n):
    """(n x n) A with (A @ v) == 5-tap Gaussian conv of v, replicate padding."""
    k = np.asarray(KVEC, dtype=np.float64)
    a = np.zeros((n, n), dtype=np.float64)
    for i in range(n):
        for t in range(-2, 3):
            p = min(max(i + t, 0), n - 1)
            a[i, p] += k[t + 2]
    return a


@functools.lru_cache(maxsize=None)
def _laplacian_operators(h, w):
    """B_H (HxH), C_W (WxW) such that laplacian(img) = img - B_H @ img @ C_W.

    Derivation (all linear):
      conv_gauss(img) = A_H @ img @ A_W^T
      new_filter      = 4 * D_H @ conv_gauss(img) @ D_W          (even mask)
      filtered2       = (2 A_H D_H A_H) @ img @ (2 A_W^T D_W A_W^T)
      laplacian(img)  = img - filtered2
    Stored in bf16: operands feed single-pass MXU matmuls w/ f32 accumulation.
    """
    a_h = _gauss_band_matrix(h)
    a_w = _gauss_band_matrix(w)
    d_h = (np.arange(h) % 2 == 0).astype(np.float64)
    d_w = (np.arange(w) % 2 == 0).astype(np.float64)
    b_h = 2.0 * (a_h @ (d_h[:, None] * a_h))        # = 2 * A_H @ diag(d_h) @ A_H
    c_w = 2.0 * (a_w.T @ (d_w[:, None] * a_w.T))    # = 2 * A_W^T @ diag(d_w) @ A_W^T
    return jnp.asarray(b_h, jnp.bfloat16), jnp.asarray(c_w, jnp.bfloat16)


# ---------------------------------------------------------------------------
# Pallas kernel: NB batch elements (NB, C, H, W) per grid step.
# ---------------------------------------------------------------------------
def _edge_loss_kernel(x_ref, y_ref, bh_ref, bw_ref, out_ref):
    nb, c, h, w = x_ref.shape
    p = nb * c
    eps2 = jnp.float32(EPS * EPS)

    bh = bh_ref[...]                                   # (H, H) bf16
    bw = bw_ref[...]                                   # (W, W) bf16

    # lap(x) - lap(y) == lap(x - y): only one Laplacian per plane.
    d0 = (x_ref[...].astype(jnp.float32)
          - y_ref[...].astype(jnp.float32)).reshape(p, h, w)

    # First contraction (over W) merged across every plane in the block:
    # one tall (P*H, W) @ (W, W) MXU matmul (bf16 operands, f32 accumulation).
    merged = (h % 8) == 0                              # leading-dim reshape is free
    if merged:
        s_all = jnp.dot(d0.reshape(p * h, w).astype(jnp.bfloat16), bw,
                        preferred_element_type=jnp.float32)
        s_all = s_all.reshape(p, h, w).astype(jnp.bfloat16)

    col = jnp.zeros((1, w), jnp.float32)
    for i in range(p):                                 # static unroll, P kept small
        if merged:
            s_i = s_all[i]
        else:
            s_i = jnp.dot(d0[i].astype(jnp.bfloat16), bw,
                          preferred_element_type=jnp.float32).astype(jnp.bfloat16)
        # Second contraction (over H): Laplacian residual r = B_H @ (d0 @ C_W).
        r = jnp.dot(bh, s_i, preferred_element_type=jnp.float32)      # (H, W) f32
        diff = d0[i] - r
        col = col + jnp.sum(jnp.sqrt(diff * diff + eps2), axis=0, keepdims=True)

    # Fully-reduced per-step partial: one f32 scalar.
    out_ref[...] = jnp.sum(col).reshape(1, 1, 1)


# ---------------------------------------------------------------------------
# Wrapper
# ---------------------------------------------------------------------------
def _vmem_capacity_bytes():
    try:
        cap = int(pltpu.get_tpu_info().vmem_capacity_bytes)
        if cap > 0:
            return cap
    except Exception:
        pass
    return 64 * 1024 * 1024            # conservative default (v7x per-core VMEM)


def _choose_batch_block(n, c, h, w, vmem_cap):
    """Largest NB (dividing N) whose per-step footprint fits the VMEM budget."""
    plane_bytes = c * h * w * 4                        # one (C, H, W) f32 plane set
    op_bytes = 2 * (h * h + w * w)                     # bf16 B_H + C_W
    # ~8x plane_bytes per batch element: x & y double-buffered (4x) plus
    # in-kernel f32/bf16 temporaries (d0, s, diff).
    budget = max(int(vmem_cap * 0.55) - 2 * op_bytes, plane_bytes)
    nb_vmem = max(1, budget // (8 * plane_bytes))
    nb_unroll = max(1, 24 // max(c, 1))                # bound static unroll of B_H dots
    cap = min(int(nb_vmem), nb_unroll, n)
    if n >= 2:
        cap = max(1, min(cap, n // 2))                 # >= 2 grid steps -> v7x megacore
    for d in range(cap, 0, -1):                        # NB must divide N exactly
        if n % d == 0:
            return d
    return 1


def edge_loss(x, y):
    """EdgeLoss.forward(x, y) -> scalar Charbonnier loss between Laplacians."""
    n, c, h, w = x.shape
    bh, bw = _laplacian_operators(h, w)

    vmem_cap = _vmem_capacity_bytes()
    nb = _choose_batch_block(n, c, h, w, vmem_cap)
    num_blocks = n // nb

    plane_bytes = c * h * w * 4
    op_bytes = 2 * (h * h + w * w)
    est = 8 * nb * plane_bytes + 2 * op_bytes + (2 << 20)
    vmem_limit = int(max(32 << 20, min(vmem_cap - (4 << 20), est + (16 << 20))))

    img_spec = pl.BlockSpec((nb, c, h, w), lambda i: (i, 0, 0, 0))
    # TODO(synk): pipeline_mode=pl.Buffered(1) on the constant operators and a
    # banded H-strip grid axis (+/-4 row halo) for multi-k planes on v7x VMEM.
    mat_h_spec = pl.BlockSpec((h, h), lambda i: (0, 0))
    mat_w_spec = pl.BlockSpec((w, w), lambda i: (0, 0))
    out_spec = pl.BlockSpec((1, 1, 1), lambda i: (i, 0, 0))

    partials = pl.pallas_call(
        _edge_loss_kernel,
        out_shape=jax.ShapeDtypeStruct((num_blocks, 1, 1), jnp.float32),
        grid_spec=pltpu.PrefetchScalarGridSpec(
            num_scalar_prefetch=0,
            grid=(num_blocks,),
            in_specs=[img_spec, img_spec, mat_h_spec, mat_w_spec],
            out_specs=out_spec,
        ),
        compiler_params=pltpu.CompilerParams(
            dimension_semantics=("parallel",),
            vmem_limit_bytes=vmem_limit,
        ),
    )(x, y, bh, bw)

    # Finalize the mean in the wrapper (cheap; keeps grid steps independent).
    return jnp.sum(partials) / jnp.float32(n * c * h * w)


# ---------------------------------------------------------------------------
# Pure-JAX reference implementing the original PyTorch semantics (sanity only).
# ---------------------------------------------------------------------------
def _ref_conv_gauss(img):  # img: (N, C, H, W)
    k = jnp.asarray(KVEC, jnp.float32)
    kern = jnp.outer(k, k)
    p = jnp.pad(img, ((0, 0), (0, 0), (2, 2), (2, 2)), mode="edge")
    h, w = img.shape[2], img.shape[3]
    out = jnp.zeros_like(img)
    for di in range(5):
        for dj in range(5):
            out = out + kern[di, dj] * p[:, :, di:di + h, dj:dj + w]
    return out


def _ref_laplacian(img):
    filtered = _ref_conv_gauss(img)
    new_filter = jnp.zeros_like(filtered)
    new_filter = new_filter.at[:, :, ::2, ::2].set(filtered[:, :, ::2, ::2] * 4)
    filtered = _ref_conv_gauss(new_filter)
    return img - filtered


def _ref_edge_loss(x, y):
    d = _ref_laplacian(x) - _ref_laplacian(y)
    return jnp.mean(jnp.sqrt(d * d + EPS * EPS))


if __name__ == "__main__":
    key = jax.random.PRNGKey(0)
    kx, ky = jax.random.split(key)
    N, C, H, W = 2, 3, 16, 16  # EdgeLoss's fixed Gaussian bank is 3-channel
    x = jax.random.normal(kx, (N, C, H, W), dtype=jnp.float32)
    y = jax.random.normal(ky, (N, C, H, W), dtype=jnp.float32)

    loss = jax.block_until_ready(edge_loss(x, y))
    ref = jax.block_until_ready(_ref_edge_loss(x, y))

    # bf16 MXU operands (single-pass matmul, f32 accumulation) land ~1e-4
    # relative from the f32 reference; 5e-3 leaves wide margin while still
    # catching any algorithmic error.
    assert jnp.allclose(loss, ref, rtol=5e-3, atol=1e-5), (loss, ref)
    print("KERNEL_OK")
</pallas_src>

<mosaic_0001>
module attributes {stable_mosaic.version = 11 : i64} {
  func.func @_edge_loss_kernel(%arg0: i32, %arg1: memref<1x3x16x16xf32, #tpu.memory_space<vmem>>, %arg2: memref<1x3x16x16xf32, #tpu.memory_space<vmem>>, %arg3: memref<16x16xbf16, #tpu.memory_space<vmem>>, %arg4: memref<16x16xbf16, #tpu.memory_space<vmem>>, %arg5: memref<1x1x1xf32, #tpu.memory_space<vmem>>) attributes {dimension_semantics = [#tpu.dimension_semantics<parallel>], iteration_bounds = array<i64: 2>, scalar_prefetch = 0 : i64, scratch_operands = 0 : i64, tpu.core_type = #tpu.core_type<tc>, window_params = [{transform_indices = @transform_0, window_bounds = array<i64: 1, 3, 16, 16>}, {transform_indices = @transform_1, window_bounds = array<i64: 1, 3, 16, 16>}, {pipeline_mode = #tpu.pipeline_mode<synchronous>, transform_indices = @transform_2, window_bounds = array<i64: 16, 16>}, {pipeline_mode = #tpu.pipeline_mode<synchronous>, transform_indices = @transform_3, window_bounds = array<i64: 16, 16>}, {transform_indices = @transform_4, window_bounds = array<i64: 1, 1, 1>}]} {
    %c0 = arith.constant 0 : index
    %c0_0 = arith.constant 0 : index
    %0 = vector.load %arg3[%c0, %c0_0] : memref<16x16xbf16, #tpu.memory_space<vmem>>, vector<16x16xbf16>
    %c0_1 = arith.constant 0 : index
    %c0_2 = arith.constant 0 : index
    %1 = vector.load %arg4[%c0_1, %c0_2] : memref<16x16xbf16, #tpu.memory_space<vmem>>, vector<16x16xbf16>
    %c0_3 = arith.constant 0 : index
    %c0_4 = arith.constant 0 : index
    %c0_5 = arith.constant 0 : index
    %c0_6 = arith.constant 0 : index
    %2 = vector.load %arg1[%c0_3, %c0_4, %c0_5, %c0_6] : memref<1x3x16x16xf32, #tpu.memory_space<vmem>>, vector<1x3x16x16xf32>
    %c0_7 = arith.constant 0 : index
    %c0_8 = arith.constant 0 : index
    %c0_9 = arith.constant 0 : index
    %c0_10 = arith.constant 0 : index
    %3 = vector.load %arg2[%c0_7, %c0_8, %c0_9, %c0_10] : memref<1x3x16x16xf32, #tpu.memory_space<vmem>>, vector<1x3x16x16xf32>
    %4 = arith.subf %2, %3 : vector<1x3x16x16xf32>
    %5 = vector.shape_cast %4 : vector<1x3x16x16xf32> to vector<3x16x16xf32>
    %6 = vector.shape_cast %5 : vector<3x16x16xf32> to vector<48x16xf32>
    %7 = arith.truncf %6 : vector<48x16xf32> to vector<48x16xbf16>
    %cst = arith.constant dense<0.000000e+00> : vector<48x16xf32>
    %8 = tpu.matmul %7, %1, %cst {dimension_numbers = #tpu.dot_dimension_numbers<[1], [0], [0], [1], [0, 0, 1, 1], [], []>} : vector<48x16xbf16>, vector<16x16xbf16>, vector<48x16xf32> -> vector<48x16xf32>
    %9 = vector.shape_cast %8 : vector<48x16xf32> to vector<3x16x16xf32>
    %10 = arith.truncf %9 : vector<3x16x16xf32> to vector<3x16x16xbf16>
    %cst_11 = arith.constant 0.000000e+00 : f32
    %11 = vector.broadcast %cst_11 : f32 to vector<1x16xf32>
    %12 = vector.extract_strided_slice %10 {offsets = [0, 0, 0], sizes = [1, 16, 16], strides = [1, 1, 1]} : vector<3x16x16xbf16> to vector<1x16x16xbf16>
    %13 = vector.shape_cast %12 : vector<1x16x16xbf16> to vector<16x16xbf16>
    %cst_12 = arith.constant dense<0.000000e+00> : vector<16x16xf32>
    %14 = tpu.matmul %0, %13, %cst_12 {dimension_numbers = #tpu.dot_dimension_numbers<[1], [0], [0], [1], [0, 0, 1, 1], [], []>} : vector<16x16xbf16>, vector<16x16xbf16>, vector<16x16xf32> -> vector<16x16xf32>
    %15 = vector.extract_strided_slice %5 {offsets = [0, 0, 0], sizes = [1, 16, 16], strides = [1, 1, 1]} : vector<3x16x16xf32> to vector<1x16x16xf32>
    %16 = vector.shape_cast %15 : vector<1x16x16xf32> to vector<16x16xf32>
    %17 = arith.subf %16, %14 : vector<16x16xf32>
    %18 = arith.mulf %17, %17 : vector<16x16xf32>
    %cst_13 = arith.constant 9.99999997E-7 : f32
    %19 = vector.broadcast %cst_13 : f32 to vector<16x16xf32>
    %20 = arith.addf %18, %19 : vector<16x16xf32>
    %21 = math.sqrt %20 : vector<16x16xf32>
    %cst_14 = arith.constant dense<0.000000e+00> : vector<16xf32>
    %22 = vector.multi_reduction <add>, %21, %cst_14 [0] : vector<16x16xf32> to vector<16xf32>
    %23 = vector.shape_cast %22 : vector<16xf32> to vector<1x16xf32>
    %24 = arith.addf %11, %23 : vector<1x16xf32>
    %25 = vector.extract_strided_slice %10 {offsets = [1, 0, 0], sizes = [1, 16, 16], strides = [1, 1, 1]} : vector<3x16x16xbf16> to vector<1x16x16xbf16>
    %26 = vector.shape_cast %25 : vector<1x16x16xbf16> to vector<16x16xbf16>
    %cst_15 = arith.constant dense<0.000000e+00> : vector<16x16xf32>
    %27 = tpu.matmul %0, %26, %cst_15 {dimension_numbers = #tpu.dot_dimension_numbers<[1], [0], [0], [1], [0, 0, 1, 1], [], []>} : vector<16x16xbf16>, vector<16x16xbf16>, vector<16x16xf32> -> vector<16x16xf32>
    %28 = vector.extract_strided_slice %5 {offsets = [1, 0, 0], sizes = [1, 16, 16], strides = [1, 1, 1]} : vector<3x16x16xf32> to vector<1x16x16xf32>
    %29 = vector.shape_cast %28 : vector<1x16x16xf32> to vector<16x16xf32>
    %30 = arith.subf %29, %27 : vector<16x16xf32>
    %31 = arith.mulf %30, %30 : vector<16x16xf32>
    %cst_16 = arith.constant 9.99999997E-7 : f32
    %32 = vector.broadcast %cst_16 : f32 to vector<16x16xf32>
    %33 = arith.addf %31, %32 : vector<16x16xf32>
    %34 = math.sqrt %33 : vector<16x16xf32>
    %cst_17 = arith.constant dense<0.000000e+00> : vector<16xf32>
    %35 = vector.multi_reduction <add>, %34, %cst_17 [0] : vector<16x16xf32> to vector<16xf32>
    %36 = vector.shape_cast %35 : vector<16xf32> to vector<1x16xf32>
    %37 = arith.addf %24, %36 : vector<1x16xf32>
    %38 = vector.extract_strided_slice %10 {offsets = [2, 0, 0], sizes = [1, 16, 16], strides = [1, 1, 1]} : vector<3x16x16xbf16> to vector<1x16x16xbf16>
    %39 = vector.shape_cast %38 : vector<1x16x16xbf16> to vector<16x16xbf16>
    %cst_18 = arith.constant dense<0.000000e+00> : vector<16x16xf32>
    %40 = tpu.matmul %0, %39, %cst_18 {dimension_numbers = #tpu.dot_dimension_numbers<[1], [0], [0], [1], [0, 0, 1, 1], [], []>} : vector<16x16xbf16>, vector<16x16xbf16>, vector<16x16xf32> -> vector<16x16xf32>
    %41 = vector.extract_strided_slice %5 {offsets = [2, 0, 0], sizes = [1, 16, 16], strides = [1, 1, 1]} : vector<3x16x16xf32> to vector<1x16x16xf32>
    %42 = vector.shape_cast %41 : vector<1x16x16xf32> to vector<16x16xf32>
    %43 = arith.subf %42, %40 : vector<16x16xf32>
    %44 = arith.mulf %43, %43 : vector<16x16xf32>
    %cst_19 = arith.constant 9.99999997E-7 : f32
    %45 = vector.broadcast %cst_19 : f32 to vector<16x16xf32>
    %46 = arith.addf %44, %45 : vector<16x16xf32>
    %47 = math.sqrt %46 : vector<16x16xf32>
    %cst_20 = arith.constant dense<0.000000e+00> : vector<16xf32>
    %48 = vector.multi_reduction <add>, %47, %cst_20 [0] : vector<16x16xf32> to vector<16xf32>
    %49 = vector.shape_cast %48 : vector<16xf32> to vector<1x16xf32>
    %50 = arith.addf %37, %49 : vector<1x16xf32>
    %51 = vector.shape_cast %50 : vector<1x16xf32> to vector<1x1x16xf32>
    %cst_21 = arith.constant dense<0.000000e+00> : vector<1xf32>
    %52 = vector.multi_reduction <add>, %51, %cst_21 [1, 2] : vector<1x1x16xf32> to vector<1xf32>
    %53 = vector.shape_cast %52 : vector<1xf32> to vector<1x1x1xf32>
    %54 = vector.extract %53[0, 0, 0] : f32 from vector<1x1x1xf32>
    %55 = vector.broadcast %54 : f32 to vector<1x1x1xf32>
    %c0_22 = arith.constant 0 : index
    %c0_23 = arith.constant 0 : index
    %c0_24 = arith.constant 0 : index
    %56 = vector.load %arg5[%c0_22, %c0_23, %c0_24] : memref<1x1x1xf32, #tpu.memory_space<vmem>>, vector<1x1x1xf32>
    tpu.vector_store %arg5[%c0_22, %c0_23, %c0_24], %55 {strides = array<i32>} : memref<1x1x1xf32, #tpu.memory_space<vmem>>, vector<1x1x1xf32>,
    return
  }
  func.func @transform_0(%arg0: i32) -> (i32, i32, i32, i32) {
    %c0_i32 = arith.constant 0 : i32
    %c0_i32_0 = arith.constant 0 : i32
    %c0_i32_1 = arith.constant 0 : i32
    %c0_i32_2 = arith.constant 0 : i32
    return %arg0, %c0_i32, %c0_i32_0, %c0_i32_1 : i32, i32, i32, i32
  }
  func.func @transform_1(%arg0: i32) -> (i32, i32, i32, i32) {
    %c0_i32 = arith.constant 0 : i32
    %c0_i32_0 = arith.constant 0 : i32
    %c0_i32_1 = arith.constant 0 : i32
    %c0_i32_2 = arith.constant 0 : i32
    return %arg0, %c0_i32, %c0_i32_0, %c0_i32_1 : i32, i32, i32, i32
  }
  func.func @transform_2(%arg0: i32) -> (i32, i32) {
    %c0_i32 = arith.constant 0 : i32
    %c0_i32_0 = arith.constant 0 : i32
    %c0_i32_1 = arith.constant 0 : i32
    return %c0_i32, %c0_i32_0 : i32, i32
  }
  func.func @transform_3(%arg0: i32) -> (i32, i32) {
    %c0_i32 = arith.constant 0 : i32
    %c0_i32_0 = arith.constant 0 : i32
    %c0_i32_1 = arith.constant 0 : i32
    return %c0_i32, %c0_i32_0 : i32, i32
  }
  func.func @transform_4(%arg0: i32) -> (i32, i32, i32) {
    %c0_i32 = arith.constant 0 : i32
    %c0_i32_0 = arith.constant 0 : i32
    %c0_i32_1 = arith.constant 0 : i32
    return %arg0, %c0_i32, %c0_i32_0 : i32, i32, i32
  }
}

</mosaic_0001>

<llo_original>
// kernel: tpu_custom_call.1
$region0: #{tpu_custom_call.1}
  #allocation0 [shape = 'u32[]', space=smem, size = 0x4, offset = 0x4, fixed_abs, tag = 'smem constant byte address 0x4 - core index']
  #allocation1 [shape = 'u32[144,128]{1,0:T(1,128)}', space=vmem, size = 0x12000, scoped, tag = 'internal scratch']
  %s0 = inlined_call_operand.hbm [shape: f32[2,3,16,16], index: 0, kind: input, shape index: {}]
  %s1 = inlined_call_operand.hbm [shape: f32[2,3,16,16], index: 1, kind: input, shape index: {}]
  %s2 = inlined_call_operand.hbm [shape: bf16[16,16], index: 2, kind: input, shape index: {}]
  %s3 = inlined_call_operand.vmem [shape: bf16[16,16], index: 3, kind: input, shape index: {}]
  %s4 = inlined_call_operand.vmem [shape: f32[2,1,1], index: 4, kind: output, shape index: {}]
  %s5 = sld [smem:[#allocation0]]
  $region61: #{tpu_custom_call.1} parent=0
    _
  %s7 = ssub.s32 1, %s5
  %s8 = scalar_select 0, %s7, %s5
  $region1: #{tpu_custom_call.1} parent=0
    #allocation2 [shape = 'u8[49152]{0}', space=vmem, size = 0xc000, scoped, tag = 'input window, operand 0']
    #allocation3 [shape = 's32[2]{0}', space=sflag, size = 0x8, scoped, tag = 'scoped memory for tpu_custom_call.1']
    #allocation4 [shape = 'u8[49152]{0}', space=vmem, size = 0xc000, scoped, tag = 'input window, operand 1']
    #allocation5 [shape = 's32[2]{0}', space=sflag, size = 0x8, scoped, tag = 'scoped memory for tpu_custom_call.1']
    #allocation6 [shape = 'u8[4096]{0}', space=vmem, size = 0x1000, scoped, tag = 'input window, operand 2, single buffered']
    %9 = vsyncpa [#allocation3], 0
    %s10 = scalar_lea.sflag [#allocation3], 1
    %11 = vsyncpa %s10, 0
    %12 = vsyncpa [#allocation5], 0
    %s13 = scalar_lea.sflag [#allocation5], 1
    %14 = vsyncpa %s13, 0
    loop: start=0, step=1, limit=4
    $region2: #{tpu_custom_call.1} parent=1 // loop_pre_header
      _
    $region3: #{tpu_custom_call.1} parent=1 // loop_header
      %s16 = sphi 0, %s20
      %p17 = scmp.ge.s32.totalorder %s16, 4
      %s26 = sphi 0, %s28
      %s29 = sphi 0, %s26
      %s30 = sphi 0, %s29
      %s46 = sphi 0, %s30
      %s52 = sphi 0, %s54
      %s55 = sphi 0, %s52
      %s56 = sphi 0, %s55
      %s72 = sphi 0, %s56
      %s76 = sphi 0, %s76
      %s78 = sphi 0, %s76
      %s79 = sphi 0, %s78
      %s93 = sphi 0, %s79
      %s97 = sphi 0, %s97
      %s99 = sphi 0, %s97
      %s100 = sphi 0, %s99
      %s114 = sphi 0, %s100
      %s120 = sphi 0, %s122
      %s123 = sphi 0, %s120
      %s124 = sphi 0, %s123
      %s140 = sphi 0, %s124
    $region4: #{tpu_custom_call.1} parent=1 // loop_header_branch
      %19 = sbr.rel (%p17) target = $region8
    $region5: #{tpu_custom_call.1} parent=1 // loop_body
      %s21 = ssub.s32 %s16, 1
      %s22 = ssub.s32 %s16, 2
      %s23 = sadd.s32 %s16, 1
      %s24 = ssub.s32 %s16, %s23
      %p25 = scmp.eq.s32.totalorder %s24, 0
      %s27 = sadd.s32 %s26, 1
      %s28 = scalar_select %p25, %s26, %s27
      %p31 = pneg %p25
      %p32 = scmp.eq.s32.totalorder %s16, 1
      %p33 = por %p31, %p32
      %p34 = scmp.ne.s32.totalorder %s26, %s29
      %p35 = scmp.eq.s32.totalorder %s16, 0
      %p36 = por %p34, %p35
      %p37 = scmp.ne.s32.totalorder %s26, %s29
      %p38 = scmp.eq.s32.totalorder %s21, 1
      %p39 = por %p37, %p38
      %p40 = scmp.ne.s32.totalorder %s29, %s30
      %p41 = scmp.eq.s32.totalorder %s21, 0
      %p42 = por %p40, %p41
      %p43 = scmp.ne.s32.totalorder %s29, %s30
      %p44 = scmp.eq.s32.totalorder %s22, 1
      %p45 = por %p43, %p44
      %p47 = scmp.ne.s32.totalorder %s30, %s46
      %p48 = scmp.eq.s32.totalorder %s22, 0
      %p49 = por %p47, %p48
      %s50 = ssub.s32 %s16, %s23
      %p51 = scmp.eq.s32.totalorder %s50, 0
      %s53 = sadd.s32 %s52, 1
      %s54 = scalar_select %p51, %s52, %s53
      %p57 = pneg %p51
      %p58 = scmp.eq.s32.totalorder %s16, 1
      %p59 = por %p57, %p58
      %p60 = scmp.ne.s32.totalorder %s52, %s55
      %p61 = scmp.eq.s32.totalorder %s16, 0
      %p62 = por %p60, %p61
      %p63 = scmp.ne.s32.totalorder %s52, %s55
      %p64 = scmp.eq.s32.totalorder %s21, 1
      %p65 = por %p63, %p64
      %p66 = scmp.ne.s32.totalorder %s55, %s56
      %p67 = scmp.eq.s32.totalorder %s21, 0
      %p68 = por %p66, %p67
      %p69 = scmp.ne.s32.totalorder %s55, %s56
      %p70 = scmp.eq.s32.totalorder %s22, 1
      %p71 = por %p69, %p70
      %p73 = scmp.ne.s32.totalorder %s56, %s72
      %p74 = scmp.eq.s32.totalorder %s22, 0
      %p75 = por %p73, %p74
      %s77 = sadd.s32 %s76, 1
      %p80 = scmp.eq.s32.totalorder %s16, 1
      %p81 = scmp.ne.s32.totalorder %s76, %s78
      %p82 = scmp.eq.s32.totalorder %s16, 0
      %p83 = por %p81, %p82
      %p84 = scmp.ne.s32.totalorder %s76, %s78
      %p85 = scmp.eq.s32.totalorder %s21, 1
      %p86 = por %p84, %p85
      %p87 = scmp.ne.s32.totalorder %s78, %s79
      %p88 = scmp.eq.s32.totalorder %s21, 0
      %p89 = por %p87, %p88
      %p90 = scmp.ne.s32.totalorder %s78, %s79
      %p91 = scmp.eq.s32.totalorder %s22, 1
      %p92 = por %p90, %p91
      %p94 = scmp.ne.s32.totalorder %s79, %s93
      %p95 = scmp.eq.s32.totalorder %s22, 0
      %p96 = por %p94, %p95
      %s98 = sadd.s32 %s97, 1
      %p101 = scmp.eq.s32.totalorder %s16, 1
      %p102 = scmp.ne.s32.totalorder %s97, %s99
      %p103 = scmp.eq.s32.totalorder %s16, 0
      %p104 = por %p102, %p103
      %p105 = scmp.ne.s32.totalorder %s97, %s99
      %p106 = scmp.eq.s32.totalorder %s21, 1
      %p107 = por %p105, %p106
      %p108 = scmp.ne.s32.totalorder %s99, %s100
      %p109 = scmp.eq.s32.totalorder %s21, 0
      %p110 = por %p108, %p109
      %p111 = scmp.ne.s32.totalorder %s99, %s100
      %p112 = scmp.eq.s32.totalorder %s22, 1
      %p113 = por %p111, %p112
      %p115 = scmp.ne.s32.totalorder %s100, %s114
      %p116 = scmp.eq.s32.totalorder %s22, 0
      %p117 = por %p115, %p116
      %s118 = ssub.s32 %s16, %s23
      %p119 = scmp.eq.s32.totalorder %s118, 0
      %s121 = sadd.s32 %s120, 1
      %s122 = scalar_select %p119, %s120, %s121
      %p125 = pneg %p119
      %p126 = scmp.eq.s32.totalorder %s16, 1
      %p127 = por %p125, %p126
      %p128 = scmp.ne.s32.totalorder %s120, %s123
      %p129 = scmp.eq.s32.totalorder %s16, 0
      %p130 = por %p128, %p129
      %p131 = scmp.ne.s32.totalorder %s120, %s123
      %p132 = scmp.eq.s32.totalorder %s21, 1
      %p133 = por %p131, %p132
      %p134 = scmp.ne.s32.totalorder %s123, %s124
      %p135 = scmp.eq.s32.totalorder %s21, 0
      %p136 = por %p134, %p135
      %p137 = scmp.ne.s32.totalorder %s123, %s124
      %p138 = scmp.eq.s32.totalorder %s22, 1
      %p139 = por %p137, %p138
      %p141 = scmp.ne.s32.totalorder %s124, %s140
      %p142 = scmp.eq.s32.totalorder %s22, 0
      %p143 = por %p141, %p142
      %p144 = scmp.le.s32.totalorder 1, %s16
      %p145 = scmp.lt.s32.totalorder %s16, 3
      %p146 = pnand %p144, %p145
      %p147 = pneg %p146
      // Predicated region
      $region9: #{tpu_custom_call.1} parent=5 // pred_check
        _
      $region10: #{tpu_custom_call.1} parent=5 // pred_check_branch
        %149 = sbr.rel (%p146) target = $region12
      $region11: #{tpu_custom_call.1} parent=5 // pred_region
        %s150 = ssub.s32 %s16, 1
        // Predicated region
        $region13: #{tpu_custom_call.1} parent=11 // pred_check
          %p151 = pneg %p89
        $region14: #{tpu_custom_call.1} parent=11 // pred_check_branch
          %153 = sbr.rel (%p151) target = $region16
        $region15: #{tpu_custom_call.1} parent=11 // pred_region
          %s155 = ssub.s32 128, 128
          %156 = vsyncadd [#allocation5], %s155
          %s157 = sshll.u32 [#allocation6], 4
          %s158 = int_to_ptr.vmem [resolvable:$true] %s157
          %163 = dma.hbm_to_vmem [thread:$0]  %s2, 128, %s158, [#allocation5], 64, 64, 4
        $region16: #{tpu_custom_call.1} parent=11 // pred_fallthru
          _
        // Predicated region
        $region17: #{tpu_custom_call.1} parent=11 // pred_check
          %p164 = pneg %p110
        $region18: #{tpu_custom_call.1} parent=11 // pred_check_branch
          %166 = sbr.rel (%p164) target = $region20
        $region19: #{tpu_custom_call.1} parent=11 // pred_region
          _
        $region20: #{tpu_custom_call.1} parent=11 // pred_fallthru
          _
      $region12: #{tpu_custom_call.1} parent=5 // pred_fallthru
        _
      %p167 = scmp.lt.s32.totalorder %s16, 2
      // Predicated region
      $region21: #{tpu_custom_call.1} parent=5 // pred_check
        %p168 = pneg %p167
      $region22: #{tpu_custom_call.1} parent=5 // pred_check_branch
        %170 = sbr.rel (%p168) target = $region24
      $region23: #{tpu_custom_call.1} parent=5 // pred_region
        // Predicated region
        $region25: #{tpu_custom_call.1} parent=23 // pred_check
          %p171 = pneg %p36
        $region26: #{tpu_custom_call.1} parent=23 // pred_check_branch
          %173 = sbr.rel (%p171) target = $region28
        $region27: #{tpu_custom_call.1} parent=23 // pred_region
          %s174 = sand.u32 %s26, 1
          %s175 = scalar_lea.sflag [#allocation3], %s174
          %s176 = sand.u32 %s26, 1
          %s177 = smul.addr %s176, 48
          %s178 = scalar_lea.vmem [#allocation2], %s177
          %s180 = ssub.s32 768, 768
          %181 = vsyncadd %s175, %s180
          %s182 = smul.addr %s16, 6
          %s183 = smul.addr %s182, 128
          %s184 = scalar_lea.hbm %s0, %s183
          %s185 = sshll.u32 %s178, 4
          %s186 = int_to_ptr.vmem [resolvable:$true] %s185
          %191 = dma.hbm_to_vmem [thread:$0]  %s184, 768, %s186, %s175, 128, 128, 8
        $region28: #{tpu_custom_call.1} parent=23 // pred_fallthru
          _
        // Predicated region
        $region29: #{tpu_custom_call.1} parent=23 // pred_check
          %p192 = pneg %p62
        $region30: #{tpu_custom_call.1} parent=23 // pred_check_branch
          %194 = sbr.rel (%p192) target = $region32
        $region31: #{tpu_custom_call.1} parent=23 // pred_region
          %s195 = sand.u32 %s16, 1
          %s196 = scalar_lea.sflag [#allocation5], %s195
          %s197 = sand.u32 %s52, 1
          %s198 = smul.addr %s197, 48
          %s199 = scalar_lea.vmem [#allocation4], %s198
          %s201 = ssub.s32 768, 768
          %202 = vsyncadd %s196, %s201
          %s203 = smul.addr %s16, 6
          %s204 = smul.addr %s203, 128
          %s205 = scalar_lea.hbm %s1, %s204
          %s206 = sshll.u32 %s199, 4
          %s207 = int_to_ptr.vmem [resolvable:$true] %s206
          %212 = dma.hbm_to_vmem [thread:$0]  %s205, 768, %s207, %s196, 128, 128, 8
        $region32: #{tpu_custom_call.1} parent=23 // pred_fallthru
          _
      $region24: #{tpu_custom_call.1} parent=5 // pred_fallthru
        _
      %p213 = scmp.le.s32.totalorder 1, %s16
      %p214 = scmp.lt.s32.totalorder %s16, 3
      %p215 = pnand %p213, %p214
      %p216 = pneg %p215
      // Predicated region
      $region33: #{tpu_custom_call.1} parent=5 // pred_check
        _
      $region34: #{tpu_custom_call.1} parent=5 // pred_check_branch
        %218 = sbr.rel (%p215) target = $region36
      $region35: #{tpu_custom_call.1} parent=5 // pred_region
        %s219 = ssub.s32 %s16, 1
        %s220 = sand.u32 %s29, 1
        %s221 = scalar_lea.sflag [#allocation3], %s220
        %s222 = sand.u32 %s29, 1
        %s223 = smul.addr %s222, 48
        %s224 = scalar_lea.vmem [#allocation2], %s223
        // Predicated region
        $region37: #{tpu_custom_call.1} parent=35 // pred_check
          %p225 = pneg %p42
        $region38: #{tpu_custom_call.1} parent=35 // pred_check_branch
          %227 = sbr.rel (%p225) target = $region40
        $region39: #{tpu_custom_call.1} parent=35 // pred_region
          %228 = dma.done %s221, 768
        $region40: #{tpu_custom_call.1} parent=35 // pred_fallthru
          _
        %s229 = sand.u32 %s21, 1
        %s230 = scalar_lea.sflag [#allocation5], %s229
        %s231 = sand.u32 %s55, 1
        %s232 = smul.addr %s231, 48
        %s233 = scalar_lea.vmem [#allocation4], %s232
        // Predicated region
        $region41: #{tpu_custom_call.1} parent=35 // pred_check
          %p234 = pneg %p68
        $region42: #{tpu_custom_call.1} parent=35 // pred_check_branch
          %236 = sbr.rel (%p234) target = $region44
        $region43: #{tpu_custom_call.1} parent=35 // pred_region
          %237 = dma.done %s230, 768
        $region44: #{tpu_custom_call.1} parent=35 // pred_fallthru
          _
        // Predicated region
        $region45: #{tpu_custom_call.1} parent=35 // pred_check
          %p238 = pneg %p89
        $region46: #{tpu_custom_call.1} parent=35 // pred_check_branch
          %240 = sbr.rel (%p238) target = $region48
        $region47: #{tpu_custom_call.1} parent=35 // pred_region
          %241 = dma.done [#allocation5], 128
        $region48: #{tpu_custom_call.1} parent=35 // pred_fallthru
          _
        %s242 = sand.u32 %s29, 1
        %s243 = scalar_lea.sflag [#allocation3], %s242
        %s244 = sand.u32 %s29, 1
        %s245 = smul.addr %s244, 48
        %s246 = scalar_lea.vmem [#allocation2], %s245
        %p247 = pneg %p42
        %p248 = pneg %p39
        %s249 = sand.u32 %s21, 1
        %s250 = scalar_lea.sflag [#allocation5], %s249
        %s251 = sand.u32 %s55, 1
        %s252 = smul.addr %s251, 48
        %s253 = scalar_lea.vmem [#allocation4], %s252
        %p254 = pneg %p68
        %p255 = pneg %p65
        %p256 = pneg %p89
        %p257 = pneg %p86
        %p258 = pneg %p110
        %p259 = pneg %p107
        %p260 = pneg %p136
        %p261 = pneg %p133
        %p262 = scmp.lt.s32.totalorder %s21, 1
        %s263 = scalar_select %p262, %s21, 1
        %s264 = scalar_lea.vmem %s4, %s263
        %p265 = scmp.lt.s32.totalorder %s21, 1
        %s266 = scalar_select %p265, %s21, 1
        %s267 = scalar_lea.vmem %s4, %s266
        %v269 = vld [vmem:[#allocation6] sm:$0xf]
        %v270 = vld [vmem:[#allocation6 + $0x4] sm:$0xf]
        %v271 = vld [vmem:[%s3] sm:$0xf]
        %v272 = vld [vmem:[%s3 + $0x4] sm:$0xf]
        %v273 = vld [vmem:[%s224] sm:$0xff]
        %v274 = vld [vmem:[%s224 + $0x8] sm:$0xff]
        %v275 = vld [vmem:[%s224 + $0x10] sm:$0xff]
        %v276 = vld [vmem:[%s224 + $0x18] sm:$0xff]
        %v277 = vld [vmem:[%s224 + $0x20] sm:$0xff]
        %v278 = vld [vmem:[%s224 + $0x28] sm:$0xff]
        %v279 = vld [vmem:[%s233] sm:$0xff]
        %v280 = vld [vmem:[%s233 + $0x8] sm:$0xff]
        %v281 = vld [vmem:[%s233 + $0x10] sm:$0xff]
        %v282 = vld [vmem:[%s233 + $0x18] sm:$0xff]
        %v283 = vld [vmem:[%s233 + $0x20] sm:$0xff]
        %v284 = vld [vmem:[%s233 + $0x28] sm:$0xff]
        %v285 = vsub.f32 %v273, %v279
        %v286 = vsub.f32 %v274, %v280
        %v287 = vsub.f32 %v275, %v281
        %v288 = vsub.f32 %v276, %v282
        %v289 = vsub.f32 %v277, %v283
        %v290 = vsub.f32 %v278, %v284
        %v291 = vpack.c.bf16 %v286, %v285
        %v292 = vpack.c.bf16 %v288, %v287
        %v293 = vpack.c.bf16 %v290, %v289
        %v296 = vunpack.c.l.b16 %v271
        %v297 = vunpack.c.l.b16 %v272
        %v298 = vpack.c.b16 %v297, %v296
        %vm300 = vcmask 130048
        %v302 = vsel %vm300, %v291, 0
        %v305 = vsel %vm300, %v292, 0
        %v308 = vsel %vm300, %v293, 0
        %310 = vmatprep.subr.bf16.mxu0 0
        %311 = vmatpush1.bf16.msra.mxu0 %v298
        %312 = vmatprep.subr.bf16.mxu0 0
        %313 = vmatpush1.bf16.msra.mxu0 0
        %314 = vmatprep.subr.bf16.mxu0 0
        %315 = vmatpush1.bf16.msra.mxu0 0
        %316 = vmatprep.subr.bf16.mxu0 0
        %317 = vmatpush1.bf16.msra.mxu0 0
        %318 = vmatprep.subr.bf16.mxu0 0
        %319 = vmatpush1.bf16.msra.mxu0 0
        %320 = vmatprep.subr.bf16.mxu0 0
        %321 = vmatpush1.bf16.msra.mxu0 0
        %322 = vmatprep.subr.bf16.mxu0 0
        %323 = vmatpush1.bf16.msra.mxu0 0
        %324 = vmatprep.subr.bf16.mxu0 0
        %325 = vmatpush1.bf16.msra.mxu0 0
        %326 = vmatprep.subr.bf16.mxu0 0
        %327 = vmatpush1.bf16.msra.mxu0 0
        %328 = vmatprep.subr.bf16.mxu0 0
        %329 = vmatpush1.bf16.msra.mxu0 0
        %330 = vmatprep.subr.bf16.mxu0 0
        %331 = vmatpush1.bf16.msra.mxu0 0
        %332 = vmatprep.subr.bf16.mxu0 0
        %333 = vmatpush1.bf16.msra.mxu0 0
        %334 = vmatprep.subr.bf16.mxu0 0
        %335 = vmatpush1.bf16.msra.mxu0 0
        %336 = vmatprep.subr.bf16.mxu0 0
        %337 = vmatpush1.bf16.msra.mxu0 0
        %338 = vmatprep.subr.bf16.mxu0 0
        %339 = vmatpush1.bf16.msra.mxu0 0
        %340 = vmatprep.subr.bf16.mxu0 0
        %341 = vmatpush1.bf16.msra.mxu0 0
        %342 = vmatprep.mubr.bf16.mxu0 0
        %343 = vmatmul.mubr.bf16.gmra.mrb[0].mxu0 %v302
        %v344 = vpop.f32.mrb[0].mxu0
        %v345 = vadd.f32 0.0, %v344
        %v346 = vpop.f32.mrb[0].mxu0
        %v347 = vpop.f32.mrb[0].mxu0
        %v348 = vadd.f32 0.0, %v347
        %v349 = vpop.f32.mrb[0].mxu0
        %350 = vmatprep.mubr.bf16.mxu0 0
        %351 = vmatmul.mubr.bf16.gmra.mrb[0].mxu0 %v305
        %v352 = vpop.f32.mrb[0].mxu0
        %v353 = vadd.f32 0.0, %v352
        %v354 = vpop.f32.mrb[0].mxu0
        %v355 = vpop.f32.mrb[0].mxu0
        %v356 = vadd.f32 0.0, %v355
        %v357 = vpop.f32.mrb[0].mxu0
        %358 = vmatprep.mubr.bf16.mxu0 0
        %359 = vmatmul.mubr.bf16.gmra.mrb[0].mxu0 %v308
        %v360 = vpop.f32.mrb[0].mxu0
        %v361 = vadd.f32 0.0, %v360
        %v362 = vpop.f32.mrb[0].mxu0
        %v363 = vpop.f32.mrb[0].mxu0
        %v364 = vadd.f32 0.0, %v363
        %v365 = vpop.f32.mrb[0].mxu0
        %366 = vdwg.mxu0
        %v367 = vpack.c.bf16 %v348, %v345
        %v368 = vpack.c.bf16 %v356, %v353
        %v369 = vpack.c.bf16 %v364, %v361
        %v372 = vunpack.c.l.b16 %v269
        %v373 = vunpack.c.l.b16 %v270
        %v374 = vpack.c.b16 %v373, %v372
        %v376 = vsel %vm300, %v374, 0
        %378 = vmatprep.subr.bf16.mxu0 0
        %379 = vmatpush1.bf16.msra.mxu0 %v367
        %380 = vmatprep.subr.bf16.mxu0 0
        %381 = vmatpush1.bf16.msra.mxu0 0
        %382 = vmatprep.subr.bf16.mxu0 0
        %383 = vmatpush1.bf16.msra.mxu0 0
        %384 = vmatprep.subr.bf16.mxu0 0
        %385 = vmatpush1.bf16.msra.mxu0 0
        %386 = vmatprep.subr.bf16.mxu0 0
        %387 = vmatpush1.bf16.msra.mxu0 0
        %388 = vmatprep.subr.bf16.mxu0 0
        %389 = vmatpush1.bf16.msra.mxu0 0
        %390 = vmatprep.subr.bf16.mxu0 0
        %391 = vmatpush1.bf16.msra.mxu0 0
        %392 = vmatprep.subr.bf16.mxu0 0
        %393 = vmatpush1.bf16.msra.mxu0 0
        %394 = vmatprep.subr.bf16.mxu0 0
        %395 = vmatpush1.bf16.msra.mxu0 0
        %396 = vmatprep.subr.bf16.mxu0 0
        %397 = vmatpush1.bf16.msra.mxu0 0
        %398 = vmatprep.subr.bf16.mxu0 0
        %399 = vmatpush1.bf16.msra.mxu0 0
        %400 = vmatprep.subr.bf16.mxu0 0
        %401 = vmatpush1.bf16.msra.mxu0 0
        %402 = vmatprep.subr.bf16.mxu0 0
        %403 = vmatpush1.bf16.msra.mxu0 0
        %404 = vmatprep.subr.bf16.mxu0 0
        %405 = vmatpush1.bf16.msra.mxu0 0
        %406 = vmatprep.subr.bf16.mxu0 0
        %407 = vmatpush1.bf16.msra.mxu0 0
        %408 = vmatprep.subr.bf16.mxu0 0
        %409 = vmatpush1.bf16.msra.mxu0 0
        %410 = vmatprep.mubr.bf16.mxu0 0
        %411 = vmatmul.mubr.bf16.gmra.mrb[0].mxu0 %v376
        %v412 = vpop.f32.mrb[0].mxu0
        %v413 = vadd.f32 0.0, %v412
        %v414 = vpop.f32.mrb[0].mxu0
        %v415 = vpop.f32.mrb[0].mxu0
        %v416 = vadd.f32 0.0, %v415
        %v417 = vpop.f32.mrb[0].mxu0
        %418 = vdwg.mxu0
        %v419 = vsub.f32 %v285, %v413
        %v420 = vsub.f32 %v286, %v416
        %v421 = vmul.f32 %v419, %v419
        %v422 = vmul.f32 %v420, %v420
        %v423 = vadd.f32 %v421, 1e-06
        %v424 = vadd.f32 %v422, 1e-06
        %v425 = vrsqrt.pop %v423
        %v426 = vmul.f32 %v423, %v425
        %vm427 = vcmp.eq.f32.partialorder %v423, inf
        %v428 = vsel %vm427, %v423, %v426
        %vm429 = vcmp.eq.f32.partialorder %v423, 0.0
        %v430 = vand.u32 %v423, 2147483648
        %v431 = vsel %vm429, %v430, %v428
        %v432 = vrsqrt.pop %v424
        %v433 = vmul.f32 %v424, %v432
        %vm434 = vcmp.eq.f32.partialorder %v424, inf
        %v435 = vsel %vm434, %v424, %v433
        %vm436 = vcmp.eq.f32.partialorder %v424, 0.0
        %v437 = vand.u32 %v424, 2147483648
        %v438 = vsel %vm436, %v437, %v435
        %v439 = vsel %vm300, %v431, 0.0
        %v440 = vsel %vm300, %v438, 0.0
        %v441 = vadd.f32 %v439, %v440
        %v442 = vrot.slane %v441, 4
        %v443 = vadd.f32 %v441, %v442
        %v444 = vrot.slane %v443, 2
        %v445 = vadd.f32 %v443, %v444
        %v446 = vrot.slane %v445, 1
        %v447 = vadd.f32 %v445, %v446
        %v448 = vadd.f32 %v447, 0.0
        %449 = vmatprep.subr.bf16.mxu0 0
        %450 = vmatpush1.bf16.msra.mxu0 %v368
        %451 = vmatprep.subr.bf16.mxu0 0
        %452 = vmatpush1.bf16.msra.mxu0 0
        %453 = vmatprep.subr.bf16.mxu0 0
        %454 = vmatpush1.bf16.msra.mxu0 0
        %455 = vmatprep.subr.bf16.mxu0 0
        %456 = vmatpush1.bf16.msra.mxu0 0
        %457 = vmatprep.subr.bf16.mxu0 0
        %458 = vmatpush1.bf16.msra.mxu0 0
        %459 = vmatprep.subr.bf16.mxu0 0
        %460 = vmatpush1.bf16.msra.mxu0 0
        %461 = vmatprep.subr.bf16.mxu0 0
        %462 = vmatpush1.bf16.msra.mxu0 0
        %463 = vmatprep.subr.bf16.mxu0 0
        %464 = vmatpush1.bf16.msra.mxu0 0
        %465 = vmatprep.subr.bf16.mxu0 0
        %466 = vmatpush1.bf16.msra.mxu0 0
        %467 = vmatprep.subr.bf16.mxu0 0
        %468 = vmatpush1.bf16.msra.mxu0 0
        %469 = vmatprep.subr.bf16.mxu0 0
        %470 = vmatpush1.bf16.msra.mxu0 0
        %471 = vmatprep.subr.bf16.mxu0 0
        %472 = vmatpush1.bf16.msra.mxu0 0
        %473 = vmatprep.subr.bf16.mxu0 0
        %474 = vmatpush1.bf16.msra.mxu0 0
        %475 = vmatprep.subr.bf16.mxu0 0
        %476 = vmatpush1.bf16.msra.mxu0 0
        %477 = vmatprep.subr.bf16.mxu0 0
        %478 = vmatpush1.bf16.msra.mxu0 0
        %479 = vmatprep.subr.bf16.mxu0 0
        %480 = vmatpush1.bf16.msra.mxu0 0
        %481 = vmatprep.mubr.bf16.mxu0 0
        %482 = vmatmul.mubr.bf16.gmra.mrb[0].mxu0 %v376
        %v483 = vpop.f32.mrb[0].mxu0
        %v484 = vadd.f32 0.0, %v483
        %v485 = vpop.f32.mrb[0].mxu0
        %v486 = vpop.f32.mrb[0].mxu0
        %v487 = vadd.f32 0.0, %v486
        %v488 = vpop.f32.mrb[0].mxu0
        %489 = vdwg.mxu0
        %v490 = vsub.f32 %v287, %v484
        %v491 = vsub.f32 %v288, %v487
        %v492 = vmul.f32 %v490, %v490
        %v493 = vmul.f32 %v491, %v491
        %v494 = vadd.f32 %v492, 1e-06
        %v495 = vadd.f32 %v493, 1e-06
        %v496 = vrsqrt.pop %v494
        %v497 = vmul.f32 %v494, %v496
        %vm498 = vcmp.eq.f32.partialorder %v494, inf
        %v499 = vsel %vm498, %v494, %v497
        %vm500 = vcmp.eq.f32.partialorder %v494, 0.0
        %v501 = vand.u32 %v494, 2147483648
        %v502 = vsel %vm500, %v501, %v499
        %v503 = vrsqrt.pop %v495
        %v504 = vmul.f32 %v495, %v503
        %vm505 = vcmp.eq.f32.partialorder %v495, inf
        %v506 = vsel %vm505, %v495, %v504
        %vm507 = vcmp.eq.f32.partialorder %v495, 0.0
        %v508 = vand.u32 %v495, 2147483648
        %v509 = vsel %vm507, %v508, %v506
        %v510 = vsel %vm300, %v502, 0.0
        %v511 = vsel %vm300, %v509, 0.0
        %v512 = vadd.f32 %v510, %v511
        %v513 = vrot.slane %v512, 4
        %v514 = vadd.f32 %v512, %v513
        %v515 = vrot.slane %v514, 2
        %v516 = vadd.f32 %v514, %v515
        %v517 = vrot.slane %v516, 1
        %v518 = vadd.f32 %v516, %v517
        %v519 = vadd.f32 %v448, %v518
        %520 = vmatprep.subr.bf16.mxu0 0
        %521 = vmatpush1.bf16.msra.mxu0 %v369
        %522 = vmatprep.subr.bf16.mxu0 0
        %523 = vmatpush1.bf16.msra.mxu0 0
        %524 = vmatprep.subr.bf16.mxu0 0
        %525 = vmatpush1.bf16.msra.mxu0 0
        %526 = vmatprep.subr.bf16.mxu0 0
        %527 = vmatpush1.bf16.msra.mxu0 0
        %528 = vmatprep.subr.bf16.mxu0 0
        %529 = vmatpush1.bf16.msra.mxu0 0
        %530 = vmatprep.subr.bf16.mxu0 0
        %531 = vmatpush1.bf16.msra.mxu0 0
        %532 = vmatprep.subr.bf16.mxu0 0
        %533 = vmatpush1.bf16.msra.mxu0 0
        %534 = vmatprep.subr.bf16.mxu0 0
        %535 = vmatpush1.bf16.msra.mxu0 0
        %536 = vmatprep.subr.bf16.mxu0 0
        %537 = vmatpush1.bf16.msra.mxu0 0
        %538 = vmatprep.subr.bf16.mxu0 0
        %539 = vmatpush1.bf16.msra.mxu0 0
        %540 = vmatprep.subr.bf16.mxu0 0
        %541 = vmatpush1.bf16.msra.mxu0 0
        %542 = vmatprep.subr.bf16.mxu0 0
        %543 = vmatpush1.bf16.msra.mxu0 0
        %544 = vmatprep.subr.bf16.mxu0 0
        %545 = vmatpush1.bf16.msra.mxu0 0
        %546 = vmatprep.subr.bf16.mxu0 0
        %547 = vmatpush1.bf16.msra.mxu0 0
        %548 = vmatprep.subr.bf16.mxu0 0
        %549 = vmatpush1.bf16.msra.mxu0 0
        %550 = vmatprep.subr.bf16.mxu0 0
        %551 = vmatpush1.bf16.msra.mxu0 0
        %552 = vmatprep.mubr.bf16.mxu0 0
        %553 = vmatmul.mubr.bf16.gmra.mrb[0].mxu0 %v376
        %v554 = vpop.f32.mrb[0].mxu0
        %v555 = vadd.f32 0.0, %v554
        %v556 = vpop.f32.mrb[0].mxu0
        %v557 = vpop.f32.mrb[0].mxu0
        %v558 = vadd.f32 0.0, %v557
        %v559 = vpop.f32.mrb[0].mxu0
        %560 = vdwg.mxu0
        %v561 = vsub.f32 %v289, %v555
        %v562 = vsub.f32 %v290, %v558
        %v563 = vmul.f32 %v561, %v561
        %v564 = vmul.f32 %v562, %v562
        %v565 = vadd.f32 %v563, 1e-06
        %v566 = vadd.f32 %v564, 1e-06
        %v567 = vrsqrt.pop %v565
        %v568 = vmul.f32 %v565, %v567
        %vm569 = vcmp.eq.f32.partialorder %v565, inf
        %v570 = vsel %vm569, %v565, %v568
        %vm571 = vcmp.eq.f32.partialorder %v565, 0.0
        %v572 = vand.u32 %v565, 2147483648
        %v573 = vsel %vm571, %v572, %v570
        %v574 = vrsqrt.pop %v566
        %v575 = vmul.f32 %v566, %v574
        %vm576 = vcmp.eq.f32.partialorder %v566, inf
        %v577 = vsel %vm576, %v566, %v575
        %vm578 = vcmp.eq.f32.partialorder %v566, 0.0
        %v579 = vand.u32 %v566, 2147483648
        %v580 = vsel %vm578, %v579, %v577
        %v581 = vsel %vm300, %v573, 0.0
        %v582 = vsel %vm300, %v580, 0.0
        %v583 = vadd.f32 %v581, %v582
        %v584 = vrot.slane %v583, 4
        %v585 = vadd.f32 %v583, %v584
        %v586 = vrot.slane %v585, 2
        %v587 = vadd.f32 %v585, %v586
        %v588 = vrot.slane %v587, 1
        %v589 = vadd.f32 %v587, %v588
        %v590 = vadd.f32 %v519, %v589
        %vm591 = vcmask 122880
        %v592 = vsel %vm591, %v590, 0.0
        %593 = vadd.xlane.f32.xlu0 %v592
        %v594 = vpop.xlane.xlu0 %593
        %v595 = vrot.slane %v594, 4
        %v596 = vadd.f32 %v594, %v595
        %v597 = vrot.slane %v596, 2
        %v598 = vadd.f32 %v596, %v597
        %v599 = vrot.slane %v598, 1
        %v600 = vadd.f32 %v598, %v599
        %s601 = vtos %v600
        %v602 = vstv %s601
        %vm603 = vcmask 0
        %604 = vst.msk [vmem:[%s267] sm:$0x1] %vm603, %v602
        %p605 = scmp.lt.s32.totalorder %s21, 1
        %s606 = scalar_select %p605, %s21, 1
        %s607 = scalar_lea.vmem %s4, %s606
        // Predicated region
        $region49: #{tpu_custom_call.1} parent=35 // pred_check
          %p608 = pneg %p133
        $region50: #{tpu_custom_call.1} parent=35 // pred_check_branch
          %610 = sbr.rel (%p608) target = $region52
        $region51: #{tpu_custom_call.1} parent=35 // pred_region
          _
        $region52: #{tpu_custom_call.1} parent=35 // pred_fallthru
          _
      $region36: #{tpu_custom_call.1} parent=5 // pred_fallthru
        _
      %p611 = scmp.le.s32.totalorder 2, %s16
      // Predicated region
      $region53: #{tpu_custom_call.1} parent=5 // pred_check
        %p612 = pneg %p611
      $region54: #{tpu_custom_call.1} parent=5 // pred_check_branch
        %614 = sbr.rel (%p612) target = $region56
      $region55: #{tpu_custom_call.1} parent=5 // pred_region
        %s615 = ssub.s32 %s16, 2
        // Predicated region
        $region57: #{tpu_custom_call.1} parent=55 // pred_check
          %p616 = pneg %p139
        $region58: #{tpu_custom_call.1} parent=55 // pred_check_branch
          %618 = sbr.rel (%p616) target = $region60
        $region59: #{tpu_custom_call.1} parent=55 // pred_region
          %p619 = scmp.lt.s32.totalorder %s22, 1
          %s620 = scalar_select %p619, %s22, 1
          %s621 = scalar_lea.vmem %s4, %s620
        $region60: #{tpu_custom_call.1} parent=55 // pred_fallthru
          _
      $region56: #{tpu_custom_call.1} parent=5 // pred_fallthru
        _
    $region6: #{tpu_custom_call.1} parent=1 // loop_footer
      %s20 = sadd.s32 1, %s16
    $region7: #{tpu_custom_call.1} parent=1 // loop_footer_branch
      %15 = sbr.rel target = $region3
    $region8: #{tpu_custom_call.1} parent=1 // loop_exit
      _
    %622 = vsyncpa [#allocation3], 1
    %s623 = scalar_lea.sflag [#allocation3], 1
    %624 = vsyncpa %s623, 1
    %625 = vsyncpa [#allocation5], 1
    %s626 = scalar_lea.sflag [#allocation5], 1
    %627 = vsyncpa %s626, 1

</llo_original>
